<compile_context>
chip_gen: v5e
topology: v5e:2x2
jax: 0.10.0
libtpu: 0.0.40
codegen_flags: <defaults>
</compile_context>

<pallas_src>
import functools

import jax
import jax.numpy as jnp
from jax import lax
from jax.experimental import pallas as pl
from jax.experimental.pallas import tpu as pltpu

HIDDEN = 32
VOCAB = 4096

ENTITY_SCHEMA = {
    "Tile":   dict(continuous=4,  discrete=3),
    "Entity": dict(continuous=14, discrete=5),
}

TILE_WEIGHT = jnp.array([0.0, 0.0, 0.02, 0.02], dtype=jnp.float32)
ENT_WEIGHT = jnp.array([0.0, 0.0, 0.0, 0.0, 0.0, 0.0, 0.1, 0.1, 0.1, 0.1,
                        0.1, 0.0, 0.0, 0.0], dtype=jnp.float32)


def _round_up(x, m):
    return (x + m - 1) // m * m


def _input_kernel(disc_smem, cont_ref, p_ref, b_ref, *rest, D, TM):
    """One M-tile of the fused Input.forward for one entity class.

    out[r] = cont[r] @ P + b_fused + sum_a G_a[disc[r, a]]
    """
    g_refs = rest[:D]          # D fused (VOCAB, H) tables, resident in VMEM
    out_ref = rest[D]          # (TM, H) output tile
    dacc_ref = rest[D + 1]     # (TM, H) VMEM scratch for gathered rows

    row0 = pl.program_id(0) * TM

    # ---- discrete path: index-driven row gather from the fused tables ------
    def row_body(m, carry):
        r = row0 + m
        acc_row = g_refs[0][pl.ds(disc_smem[r * D + 0], 1), :]
        for a in range(1, D):
            acc_row = acc_row + g_refs[a][pl.ds(disc_smem[r * D + a], 1), :]
        dacc_ref[pl.ds(m, 1), :] = acc_row
        return carry

    lax.fori_loop(0, TM, row_body, 0)

    # ---- continuous path: one (TM, C) @ (C, H) dot, biases pre-fused -------
    out_ref[...] = (
        jnp.dot(cont_ref[...], p_ref[...], preferred_element_type=jnp.float32)
        + b_ref[...]
        + dacc_ref[...]
    )


def _run_entity_kernel(cont, disc, p_fused, b_fused, g_tables, *, H):
    M, C = cont.shape
    D = disc.shape[1]
    V = g_tables[0].shape[0]

    TM = min(512, _round_up(max(M, 8), 8))
    Mp = _round_up(M, TM)
    if Mp != M:
        cont = jnp.pad(cont, ((0, Mp - M), (0, 0)))
        disc = jnp.pad(disc, ((0, Mp - M), (0, 0)))
    grid = (Mp // TM,)

    disc_flat = disc.reshape(-1).astype(jnp.int32)   # scalar-prefetched to SMEM

    in_specs = [
        pl.BlockSpec((TM, C), lambda i, d: (i, 0)),   # continuous rows (tiled)
        pl.BlockSpec((C, H), lambda i, d: (0, 0)),    # fused continuous weights
        pl.BlockSpec((1, H), lambda i, d: (0, 0)),    # fused bias
    ] + [pl.BlockSpec((V, H), lambda i, d: (0, 0)) for _ in range(D)]

    # TODO(synk): pack the output lane-dense ((Mp/4, 128)) for unmasked vst;
    # kept (Mp, 32) here for clarity since H=32 < 128 lanes.
    out = pl.pallas_call(
        functools.partial(_input_kernel, D=D, TM=TM),
        out_shape=jax.ShapeDtypeStruct((Mp, H), jnp.float32),
        grid_spec=pltpu.PrefetchScalarGridSpec(
            num_scalar_prefetch=1,
            grid=grid,
            in_specs=in_specs,
            out_specs=pl.BlockSpec((TM, H), lambda i, d: (i, 0)),
            scratch_shapes=[pltpu.VMEM((TM, H), jnp.float32)],
        ),
        compiler_params=pltpu.CompilerParams(
            dimension_semantics=("parallel",),
            vmem_limit_bytes=40 * 1024 * 1024,
        ),
    )(disc_flat, cont, p_fused, b_fused, *g_tables)
    return out[:M]


def _fold_params(p, scale, *, C, D, H):
    """Fold the attributes Linear (+ attribute scaling) into the embeddings."""
    hi = jax.lax.Precision.HIGHEST
    attr_w = p['attr_w']                         # ((C+D)*H, H)
    wc = attr_w[:C * H].reshape(C, H, H)
    wd = attr_w[C * H:].reshape(D, H, H)
    # P[a, :] = scale[a] * cemb_w[a, :] @ wc[a]                    -> (C, H)
    p_fused = scale[:, None] * jnp.einsum('ch,chk->ck', p['cemb_w'], wc,
                                          precision=hi)
    # b_fused = attr_b + sum_a cemb_b[a, :] @ wc[a]                -> (1, H)
    b_fused = (p['attr_b'] +
               jnp.einsum('ch,chk->k', p['cemb_b'], wc, precision=hi)
               ).reshape(1, H)
    # G_a = table @ wd[a]                                          -> D x (V, H)
    g_tables = [jnp.einsum('vh,hk->vk', p['table'], wd[a], precision=hi)
                for a in range(D)]
    return p_fused.astype(jnp.float32), b_fused.astype(jnp.float32), g_tables


def init_params(key):
    """Deterministic synthetic parameters (matches the module's __init__ shapes)."""
    params = {}
    for idx, (name, schema) in enumerate(ENTITY_SCHEMA.items()):
        C, D = schema["continuous"], schema["discrete"]
        keys = jax.random.split(jax.random.fold_in(key, idx), 5)
        params[name] = dict(
            cemb_w=0.10 * jax.random.normal(keys[0], (C, HIDDEN), jnp.float32),
            cemb_b=0.10 * jax.random.normal(keys[1], (C, HIDDEN), jnp.float32),
            table =0.10 * jax.random.normal(keys[2], (VOCAB, HIDDEN), jnp.float32),
            attr_w=0.05 * jax.random.normal(keys[3], ((C + D) * HIDDEN, HIDDEN), jnp.float32),
            attr_b=0.05 * jax.random.normal(keys[4], (HIDDEN,), jnp.float32),
        )
    return params


def input_forward(params, inp):
    """JAX/Pallas port of Input.forward.  Returns {'N', 'Tile', 'Entity'}."""
    inp = {k: dict(v) for k, v in inp.items()}            # functional copy of the IO dict
    # inp['Entity']['Discrete'] *= 0
    inp['Entity']['Discrete'] = jnp.zeros_like(inp['Entity']['Discrete'])
    scales = {'Tile': TILE_WEIGHT, 'Entity': ENT_WEIGHT}
    entity_lookup = {'N': inp['Entity'].pop('N')}
    for name, entities in inp.items():
        C = ENTITY_SCHEMA[name]['continuous']
        D = ENTITY_SCHEMA[name]['discrete']
        cont = entities['Continuous'].astype(jnp.float32)
        disc = entities['Discrete'].astype(jnp.int32)
        B, N, _ = cont.shape
        p_fused, b_fused, g_tables = _fold_params(
            params[name], scales[name], C=C, D=D, H=HIDDEN)
        out2d = _run_entity_kernel(
            cont.reshape(B * N, C), disc.reshape(B * N, D),
            p_fused, b_fused, g_tables, H=HIDDEN)
        entity_lookup[name] = out2d.reshape(B, N, HIDDEN)
    return entity_lookup


def input_forward_ref(params, inp):
    """Pure-JAX reference mirroring the PyTorch semantics, for validation."""
    inp = {k: dict(v) for k, v in inp.items()}
    inp['Entity']['Discrete'] = jnp.zeros_like(inp['Entity']['Discrete'])
    scales = {'Tile': TILE_WEIGHT, 'Entity': ENT_WEIGHT}
    out = {'N': inp['Entity'].pop('N')}
    for name, entities in inp.items():
        p = params[name]
        cont = entities['Continuous'].astype(jnp.float32) * scales[name]
        disc = entities['Discrete'].astype(jnp.int32)
        emb_c = cont[..., None] * p['cemb_w'] + p['cemb_b']     # (B, N, C, H)
        emb_d = p['table'][disc]                                # (B, N, D, H)
        emb = jnp.concatenate([emb_c, emb_d], axis=2)
        B, N = emb.shape[:2]
        flat = emb.reshape(B, N, -1)
        out[name] = flat @ p['attr_w'] + p['attr_b']
    return out


if __name__ == "__main__":
    key = jax.random.PRNGKey(0)
    params = init_params(key)

    B, N_TILE, N_ENT = 2, 16, 8
    kc = jax.random.split(jax.random.fold_in(key, 123), 5)
    inp = {
        'Tile': {
            'Continuous': jax.random.normal(kc[0], (B, N_TILE, 4), jnp.float32),
            'Discrete':   jax.random.randint(kc[1], (B, N_TILE, 3), 0, VOCAB, jnp.int32),
        },
        'Entity': {
            'Continuous': jax.random.normal(kc[2], (B, N_ENT, 14), jnp.float32),
            'Discrete':   jax.random.randint(kc[3], (B, N_ENT, 5), 0, VOCAB, jnp.int32),
            'N':          jax.random.randint(kc[4], (B,), 1, N_ENT + 1, jnp.int32),
        },
    }

    out = input_forward(params, inp)
    jax.block_until_ready(out)

    ref = input_forward_ref(params, inp)
    for name in ('Tile', 'Entity'):
        assert out[name].shape == ref[name].shape, name
        assert jnp.allclose(out[name], ref[name], rtol=2e-2, atol=2e-2), name
    assert jnp.array_equal(out['N'], inp['Entity']['N'])

    print("KERNEL_OK")
</pallas_src>

<mosaic_0001>
module attributes {stable_mosaic.version = 11 : i64} {
  func.func @_input_kernel(%arg0: i32, %arg1: memref<96xi32, #tpu.memory_space<smem>>, %arg2: memref<32x4xf32, #tpu.memory_space<vmem>>, %arg3: memref<4x32xf32, #tpu.memory_space<vmem>>, %arg4: memref<1x32xf32, #tpu.memory_space<vmem>>, %arg5: memref<4096x32xf32, #tpu.memory_space<vmem>>, %arg6: memref<4096x32xf32, #tpu.memory_space<vmem>>, %arg7: memref<4096x32xf32, #tpu.memory_space<vmem>>, %arg8: memref<32x32xf32, #tpu.memory_space<vmem>>, %arg9: memref<32x32xf32, #tpu.memory_space<vmem>>) attributes {dimension_semantics = [#tpu.dimension_semantics<parallel>], iteration_bounds = array<i64: 1>, scalar_prefetch = 1 : i64, scratch_operands = 1 : i64, tpu.core_type = #tpu.core_type<tc>, window_params = [{transform_indices = @transform_0, window_bounds = array<i64: 32, 4>}, {pipeline_mode = #tpu.pipeline_mode<synchronous>, transform_indices = @transform_1, window_bounds = array<i64: 4, 32>}, {pipeline_mode = #tpu.pipeline_mode<synchronous>, transform_indices = @transform_2, window_bounds = array<i64: 1, 32>}, {pipeline_mode = #tpu.pipeline_mode<synchronous>, transform_indices = @transform_3, window_bounds = array<i64: 4096, 32>}, {pipeline_mode = #tpu.pipeline_mode<synchronous>, transform_indices = @transform_4, window_bounds = array<i64: 4096, 32>}, {pipeline_mode = #tpu.pipeline_mode<synchronous>, transform_indices = @transform_5, window_bounds = array<i64: 4096, 32>}, {transform_indices = @transform_6, window_bounds = array<i64: 32, 32>}]} {
    %c32_i32 = arith.constant 32 : i32
    %0 = arith.muli %arg0, %c32_i32 : i32
    %c0_i32 = arith.constant 0 : i32
    %c32_i32_0 = arith.constant 32 : i32
    %1 = arith.addi %c0_i32, %c32_i32_0 : i32
    %c1_i32 = arith.constant 1 : i32
    scf.for %arg10 = %c0_i32 to %1 step %c1_i32  : i32 {
      %11 = arith.addi %0, %arg10 : i32
      %c3_i32 = arith.constant 3 : i32
      %12 = arith.muli %11, %c3_i32 : i32
      %c0_i32_11 = arith.constant 0 : i32
      %13 = arith.addi %12, %c0_i32_11 : i32
      %14 = arith.index_cast %13 : i32 to index
      %15 = memref.load %arg1[%14] : memref<96xi32, #tpu.memory_space<smem>>
      %16 = arith.index_cast %15 : i32 to index
      %c0_12 = arith.constant 0 : index
      %17 = vector.load %arg5[%16, %c0_12] : memref<4096x32xf32, #tpu.memory_space<vmem>>, vector<1x32xf32>
      %c3_i32_13 = arith.constant 3 : i32
      %18 = arith.muli %11, %c3_i32_13 : i32
      %c1_i32_14 = arith.constant 1 : i32
      %19 = arith.addi %18, %c1_i32_14 : i32
      %20 = arith.index_cast %19 : i32 to index
      %21 = memref.load %arg1[%20] : memref<96xi32, #tpu.memory_space<smem>>
      %22 = arith.index_cast %21 : i32 to index
      %c0_15 = arith.constant 0 : index
      %23 = vector.load %arg6[%22, %c0_15] : memref<4096x32xf32, #tpu.memory_space<vmem>>, vector<1x32xf32>
      %24 = arith.addf %17, %23 : vector<1x32xf32>
      %c3_i32_16 = arith.constant 3 : i32
      %25 = arith.muli %11, %c3_i32_16 : i32
      %c2_i32 = arith.constant 2 : i32
      %26 = arith.addi %25, %c2_i32 : i32
      %27 = arith.index_cast %26 : i32 to index
      %28 = memref.load %arg1[%27] : memref<96xi32, #tpu.memory_space<smem>>
      %29 = arith.index_cast %28 : i32 to index
      %c0_17 = arith.constant 0 : index
      %30 = vector.load %arg7[%29, %c0_17] : memref<4096x32xf32, #tpu.memory_space<vmem>>, vector<1x32xf32>
      %31 = arith.addf %24, %30 : vector<1x32xf32>
      %32 = arith.index_cast %arg10 : i32 to index
      %c0_18 = arith.constant 0 : index
      %33 = vector.load %arg9[%32, %c0_18] : memref<32x32xf32, #tpu.memory_space<vmem>>, vector<1x32xf32>
      tpu.vector_store %arg9[%32, %c0_18], %31 {strides = array<i32>} : memref<32x32xf32, #tpu.memory_space<vmem>>, vector<1x32xf32>,
    }
    %c32_i32_1 = arith.constant 32 : i32
    %c0 = arith.constant 0 : index
    %c0_2 = arith.constant 0 : index
    %2 = vector.load %arg2[%c0, %c0_2] : memref<32x4xf32, #tpu.memory_space<vmem>>, vector<32x4xf32>
    %c0_3 = arith.constant 0 : index
    %c0_4 = arith.constant 0 : index
    %3 = vector.load %arg3[%c0_3, %c0_4] : memref<4x32xf32, #tpu.memory_space<vmem>>, vector<4x32xf32>
    %cst = arith.constant dense<0.000000e+00> : vector<32x32xf32>
    %4 = tpu.matmul %2, %3, %cst {dimension_numbers = #tpu.dot_dimension_numbers<[1], [0], [0], [1], [0, 0, 1, 1], [], []>} : vector<32x4xf32>, vector<4x32xf32>, vector<32x32xf32> -> vector<32x32xf32>
    %c0_5 = arith.constant 0 : index
    %c0_6 = arith.constant 0 : index
    %5 = vector.load %arg4[%c0_5, %c0_6] : memref<1x32xf32, #tpu.memory_space<vmem>>, vector<1x32xf32>
    %6 = vector.broadcast %5 : vector<1x32xf32> to vector<32x32xf32>
    %7 = arith.addf %4, %6 : vector<32x32xf32>
    %c0_7 = arith.constant 0 : index
    %c0_8 = arith.constant 0 : index
    %8 = vector.load %arg9[%c0_7, %c0_8] : memref<32x32xf32, #tpu.memory_space<vmem>>, vector<32x32xf32>
    %9 = arith.addf %7, %8 : vector<32x32xf32>
    %c0_9 = arith.constant 0 : index
    %c0_10 = arith.constant 0 : index
    %10 = vector.load %arg8[%c0_9, %c0_10] : memref<32x32xf32, #tpu.memory_space<vmem>>, vector<32x32xf32>
    tpu.vector_store %arg8[%c0_9, %c0_10], %9 {strides = array<i32>} : memref<32x32xf32, #tpu.memory_space<vmem>>, vector<32x32xf32>,
    return
  }
  func.func @transform_0(%arg0: i32, %arg1: memref<96xi32, #tpu.memory_space<smem>>) -> (i32, i32) {
    %c0_i32 = arith.constant 0 : i32
    %c0_i32_0 = arith.constant 0 : i32
    return %arg0, %c0_i32 : i32, i32
  }
  func.func @transform_1(%arg0: i32, %arg1: memref<96xi32, #tpu.memory_space<smem>>) -> (i32, i32) {
    %c0_i32 = arith.constant 0 : i32
    %c0_i32_0 = arith.constant 0 : i32
    %c0_i32_1 = arith.constant 0 : i32
    return %c0_i32, %c0_i32_0 : i32, i32
  }
  func.func @transform_2(%arg0: i32, %arg1: memref<96xi32, #tpu.memory_space<smem>>) -> (i32, i32) {
    %c0_i32 = arith.constant 0 : i32
    %c0_i32_0 = arith.constant 0 : i32
    %c0_i32_1 = arith.constant 0 : i32
    return %c0_i32, %c0_i32_0 : i32, i32
  }
  func.func @transform_3(%arg0: i32, %arg1: memref<96xi32, #tpu.memory_space<smem>>) -> (i32, i32) {
    %c0_i32 = arith.constant 0 : i32
    %c0_i32_0 = arith.constant 0 : i32
    %c0_i32_1 = arith.constant 0 : i32
    return %c0_i32, %c0_i32_0 : i32, i32
  }
  func.func @transform_4(%arg0: i32, %arg1: memref<96xi32, #tpu.memory_space<smem>>) -> (i32, i32) {
    %c0_i32 = arith.constant 0 : i32
    %c0_i32_0 = arith.constant 0 : i32
    %c0_i32_1 = arith.constant 0 : i32
    return %c0_i32, %c0_i32_0 : i32, i32
  }
  func.func @transform_5(%arg0: i32, %arg1: memref<96xi32, #tpu.memory_space<smem>>) -> (i32, i32) {
    %c0_i32 = arith.constant 0 : i32
    %c0_i32_0 = arith.constant 0 : i32
    %c0_i32_1 = arith.constant 0 : i32
    return %c0_i32, %c0_i32_0 : i32, i32
  }
  func.func @transform_6(%arg0: i32, %arg1: memref<96xi32, #tpu.memory_space<smem>>) -> (i32, i32) {
    %c0_i32 = arith.constant 0 : i32
    %c0_i32_0 = arith.constant 0 : i32
    return %arg0, %c0_i32 : i32, i32
  }
}

</mosaic_0001>

<llo_original>
// kernel: tpu_custom_call.1
$region0: #{tpu_custom_call.1}
  #allocation0 [shape = 'u32[]', space=smem, size = 0x4, offset = 0x4, fixed_abs, tag = 'smem constant byte address 0x4 - core index']
  #allocation1 [shape = 'u32[72,128]{1,0:T(1,128)}', space=vmem, size = 0x9000, scoped, tag = 'internal scratch']
  #allocation2 [shape = 'f32[32,32]{1,0:T(8,128)}', space=vmem, size = 0x4000, scoped, tag = 'scratch operand']
  #allocation3 [shape = 's32[1]{0}', space=sflag, size = 0x4, scoped, tag = 'scoped memory for tpu_custom_call.1']
  #allocation4 [shape = 'u8[512]{0}', space=smem, size = 0x200, scoped, tag = 'prefetched SMEM operand 0']
  %s0 = inlined_call_operand.vmem [shape: s32[96], index: 0, kind: input, shape index: {}]
  %s1 = inlined_call_operand.vmem [shape: f32[32,4], index: 1, kind: input, shape index: {}]
  %s2 = inlined_call_operand.vmem [shape: f32[4,32], index: 2, kind: input, shape index: {}]
  %s3 = inlined_call_operand.vmem [shape: f32[1,32], index: 3, kind: input, shape index: {}]
  %s4 = inlined_call_operand.vmem [shape: f32[4096,32], index: 4, kind: input, shape index: {}]
  %s5 = inlined_call_operand.vmem [shape: f32[4096,32], index: 5, kind: input, shape index: {}]
  %s6 = inlined_call_operand.vmem [shape: f32[4096,32], index: 6, kind: input, shape index: {}]
  %s7 = inlined_call_operand.hbm [shape: f32[32,32], index: 7, kind: output, shape index: {}]
  %s8 = sld [smem:[#allocation0]]
  $region41: #{tpu_custom_call.1} parent=0
    _
  %s10 = ssub.s32 1, %s8
  %s11 = scalar_select 0, %s10, %s8
  %s13 = sshll.u32 %s0, 4
  %s14 = int_to_ptr.vmem [resolvable:$true] %s13
  %16 = dma.vmem_to_smem %s14, 16, [#allocation4], [#allocation3]
  %18 = dma.done [#allocation3], 16
  %19 = sfence
  $region1: #{tpu_custom_call.1} parent=0
    #allocation5 [shape = 'u8[16384]{0}', space=vmem, size = 0x4000, scoped, tag = 'output window, operand 0, single buffered']
    #allocation6 [shape = 's32[1]{0}', space=sflag, size = 0x4, scoped, tag = 'scoped memory for tpu_custom_call.1']
    %20 = vsyncpa [#allocation6], 0
    // Predicated region
    $region2: #{tpu_custom_call.1} parent=1 // pred_check
      _
    $region3: #{tpu_custom_call.1} parent=1 // pred_check_branch
      %22 = sbr.rel (0) target = $region5
    $region4: #{tpu_custom_call.1} parent=1 // pred_region
      _
    $region5: #{tpu_custom_call.1} parent=1 // pred_fallthru
      _
    // Predicated region
    $region6: #{tpu_custom_call.1} parent=1 // pred_check
      _
    $region7: #{tpu_custom_call.1} parent=1 // pred_check_branch
      %24 = sbr.rel (0) target = $region9
    $region8: #{tpu_custom_call.1} parent=1 // pred_region
      _
    $region9: #{tpu_custom_call.1} parent=1 // pred_fallthru
      _
    // Predicated region
    $region10: #{tpu_custom_call.1} parent=1 // pred_check
      _
    $region11: #{tpu_custom_call.1} parent=1 // pred_check_branch
      %26 = sbr.rel (0) target = $region13
    $region12: #{tpu_custom_call.1} parent=1 // pred_region
      _
    $region13: #{tpu_custom_call.1} parent=1 // pred_fallthru
      _
    // Predicated region
    $region14: #{tpu_custom_call.1} parent=1 // pred_check
      _
    $region15: #{tpu_custom_call.1} parent=1 // pred_check_branch
      %28 = sbr.rel (0) target = $region17
    $region16: #{tpu_custom_call.1} parent=1 // pred_region
      _
    $region17: #{tpu_custom_call.1} parent=1 // pred_fallthru
      _
    // Predicated region
    $region18: #{tpu_custom_call.1} parent=1 // pred_check
      _
    $region19: #{tpu_custom_call.1} parent=1 // pred_check_branch
      %30 = sbr.rel (0) target = $region21
    $region20: #{tpu_custom_call.1} parent=1 // pred_region
      _
    $region21: #{tpu_custom_call.1} parent=1 // pred_fallthru
      _
    // Predicated region
    $region22: #{tpu_custom_call.1} parent=1 // pred_check
      _
    $region23: #{tpu_custom_call.1} parent=1 // pred_check_branch
      %32 = sbr.rel (0) target = $region25
    $region24: #{tpu_custom_call.1} parent=1 // pred_region
      _
    $region25: #{tpu_custom_call.1} parent=1 // pred_fallthru
      _
    %s33 = smul.u32 0, 32
    loop: start=0, step=1, limit=32
    $region26: #{tpu_custom_call.1} parent=1 // loop_pre_header
      _
    $region27: #{tpu_custom_call.1} parent=1 // loop_header
      %s35 = sphi 0, %s39
      %p36 = scmp.ge.s32.totalorder %s35, 32
    $region28: #{tpu_custom_call.1} parent=1 // loop_header_branch
      %38 = sbr.rel (%p36) target = $region32
    $region29: #{tpu_custom_call.1} parent=1 // loop_body
      %s40 = sadd.s32 %s33, %s35
      %s41 = smul.u32 %s40, 3
      %s42 = sld [smem:[#allocation4 + %s41]]
      %s43 = scalar_lea.vmem %s4, %s42
      %v44 = vld [vmem:[%s43] sm:$0x1]
      %s45 = sadd.s32 %s41, 1
      %s46 = sld [smem:[#allocation4 + %s45]]
      %s47 = scalar_lea.vmem %s5, %s46
      %v48 = vld [vmem:[%s47] sm:$0x1]
      %v49 = vadd.f32 %v44, %v48
      %s50 = sadd.s32 %s41, 2
      %s51 = sld [smem:[#allocation4 + %s50]]
      %s52 = scalar_lea.vmem %s6, %s51
      %v53 = vld [vmem:[%s52] sm:$0x1]
      %v54 = vadd.f32 %v49, %v53
      %s55 = scalar_lea.vmem [#allocation2], %s35
      %vm56 = vcmask 253952
      %57 = vst.msk [vmem:[%s55] sm:$0x1] %vm56, %v54
    $region30: #{tpu_custom_call.1} parent=1 // loop_footer
      %s39 = sadd.s32 1, %s35
    $region31: #{tpu_custom_call.1} parent=1 // loop_footer_branch
      %34 = sbr.rel target = $region27
    $region32: #{tpu_custom_call.1} parent=1 // loop_exit
      _
    %v58 = vld [vmem:[%s1] sm:$0xff]
    %v59 = vld [vmem:[%s1 + $0x8] sm:$0xff]
    %v60 = vld [vmem:[%s1 + $0x10] sm:$0xff]
    %v61 = vld [vmem:[%s1 + $0x18] sm:$0xff]
    %v62 = vld [vmem:[%s2] sm:$0xf]
    %v63 = vld [vmem:[%s3] sm:$0x1]
    %v65 = vperm.slane %v63, 0
    %vm67 = vcmask 31744
    %v69 = vsel %vm67, %v58, 0
    %v72 = vsel %vm67, %v59, 0
    %v75 = vsel %vm67, %v60, 0
    %v78 = vsel %vm67, %v61, 0
    %vm80 = vcmask 1043456
    %v82 = vsel %vm80, %v62, 0
    %84 = vmatpush.msra.mxu0 0.0
    %85 = vmatpush.msra.mxu0 0.0
    %86 = vmatpush.msra.mxu0 0.0
    %87 = vmatpush.msra.mxu0 0.0
    %88 = vmatpush.msra.mxu0 0.0
    %89 = vmatpush.msra.mxu0 0.0
    %90 = vmatpush.msra.mxu0 0.0
    %91 = vmatpush.msra.mxu0 0.0
    %92 = vmatpush.msra.mxu0 0.0
    %93 = vmatpush.msra.mxu0 0.0
    %94 = vmatpush.msra.mxu0 0.0
    %95 = vmatpush.msra.mxu0 0.0
    %96 = vmatpush.msra.mxu0 0.0
    %97 = vmatpush.msra.mxu0 0.0
    %98 = vmatpush.msra.mxu0 0.0
    %99 = vmatpush.msra.mxu0 %v82
    %100 = vmatmul.f32.gmra.mxu0 %v69
    %v101 = vpop.f32.mrf.mxu0
    %v102 = vadd.f32 %v65, %v101
    %103 = vmatmul.f32.gmra.mxu0 %v72
    %v104 = vpop.f32.mrf.mxu0
    %v105 = vadd.f32 %v65, %v104
    %106 = vmatmul.f32.gmra.mxu0 %v75
    %v107 = vpop.f32.mrf.mxu0
    %v108 = vadd.f32 %v65, %v107
    %109 = vmatmul.f32.gmra.mxu0 %v78
    %v110 = vpop.f32.mrf.mxu0
    %v111 = vadd.f32 %v65, %v110
    %112 = vdwg.mxu0
    %v113 = vld [vmem:[#allocation2] sm:$0xff]
    %v114 = vld [vmem:[#allocation2 + $0x8] sm:$0xff]
    %v115 = vld [vmem:[#allocation2 + $0x10] sm:$0xff]
    %v116 = vld [vmem:[#allocation2 + $0x18] sm:$0xff]
    %v117 = vadd.f32 %v102, %v113
    %v118 = vadd.f32 %v105, %v114
    %v119 = vadd.f32 %v108, %v115
    %v120 = vadd.f32 %v111, %v116
    %vm121 = vcmask 261120
    %122 = vst.msk [vmem:[#allocation5] sm:$0xff] %vm121, %v117
    %123 = vst.msk [vmem:[#allocation5 + $0x8] sm:$0xff] %vm121, %v118
    %124 = vst.msk [vmem:[#allocation5 + $0x10] sm:$0xff] %vm121, %v119
    %125 = vst.msk [vmem:[#allocation5 + $0x18] sm:$0xff] %vm121, %v120
    // Predicated region
    $region33: #{tpu_custom_call.1} parent=1 // pred_check
      _
    $region34: #{tpu_custom_call.1} parent=1 // pred_check_branch
      %127 = sbr.rel (0) target = $region36
    $region35: #{tpu_custom_call.1} parent=1 // pred_region
      %129 = vsyncadd [#allocation6], 0
      %s130 = sshll.u32 [#allocation5], 4
      %s131 = int_to_ptr.vmem [resolvable:$true] %s130
      %s132 = sshll.u32 %s7, 4
      %s133 = int_to_ptr.hbm [resolvable:$true] %s132
      %138 = dma.vmem_to_hbm [thread:$0]  %s131, 512, %s133, [#allocation6], 128, 128, 8
    $region36: #{tpu_custom_call.1} parent=1 // pred_fallthru
      _
    // Predicated region
    $region37: #{tpu_custom_call.1} parent=1 // pred_check
      _
    $region38: #{tpu_custom_call.1} parent=1 // pred_check_branch
      %140 = sbr.rel (0) target = $region40
    $region39: #{tpu_custom_call.1} parent=1 // pred_region
      %142 = dma.done [#allocation6], 512
    $region40: #{tpu_custom_call.1} parent=1 // pred_fallthru
      _
    %143 = vsyncpa [#allocation6], 1

</llo_original>
